<compile_context>
chip_gen: v6e
topology: v6e:2x2x1
jax: 0.10.0
libtpu: 0.0.40
codegen_flags: <defaults>
</compile_context>

<pallas_src>
import functools

import jax
import jax.numpy as jnp
from jax import lax
from jax.experimental import pallas as pl
from jax.experimental.pallas import tpu as pltpu


def _round_up(v, m):
    return -(-v // m) * m


def _pick_chunk(tile, n_classes):
    """Largest lane chunk (multiple of 128, bounded by vreg pressure) dividing tile."""
    target = 512 if n_classes <= 16 else 256
    for c in (512, 384, 256, 128):
        if c <= target and tile % c == 0:
            return c
    return 128


def _softiou_kernel(x_ref, t_ref, out_ref, inter_acc, sum_acc, *,
                    hw, tile, chunk, n_classes, nk_total, nkps, n_split,
                    has_partial):
    # x_ref:   (1, C, tile)  logits tile (native dtype) for one batch element
    # t_ref:   (1, 1, tile)  int32 labels tile (255 = ignore)
    # out_ref: (1, 1, C, 2)  -> [..., 0] = inter partial, [..., 1] = union partial
    # inter_acc, sum_acc: (C, chunk) f32 lane-dense accumulators (persist over k)
    p = pl.program_id(1)
    k = pl.program_id(2)
    global_t = p * nkps + k                      # logical spatial tile index

    @pl.when(k == 0)
    def _init():
        inter_acc[...] = jnp.zeros_like(inter_acc)
        sum_acc[...] = jnp.zeros_like(sum_acc)

    # (C,1) class ids; the == below broadcasts against the (1,chunk) labels so
    # no (C,chunk) iota is materialized on the hot VALU path.
    cls = lax.broadcasted_iota(jnp.int32, (n_classes, 1), 0)

    def accumulate(masked):
        n_chunks = tile // chunk

        def body(j, carry):
            start = pl.multiple_of(j * chunk, chunk)
            x = x_ref[0, :, pl.ds(start, chunk)].astype(jnp.float32)   # (C, chunk)
            t = t_ref[0, :, pl.ds(start, chunk)]                       # (1, chunk)
            if masked:
                lane = lax.broadcasted_iota(jnp.int32, (1, chunk), 1)
                valid = (global_t * tile + start + lane) < hw          # (1, chunk)
                x = jnp.where(valid, x, 0.0)   # keep exp() finite in padded lanes

            # softmax over the class axis (sublanes); divide goes to the EUP.
            m = jnp.max(x, axis=0, keepdims=True)
            e = jnp.exp(x - m)
            z = jnp.sum(e, axis=0, keepdims=True)
            pred = e * pl.reciprocal(z, approx=True)                   # (C, chunk)

            # One-hot over kept classes only: label 255 never matches a class
            # row, so ignored pixels get an all-zero one-hot column, exactly
            # like the reference's dropped extra channel (pred still counts
            # toward the union for ignored pixels, as in the reference).
            hit = t == cls                                             # (C, chunk)
            if masked:
                hit = jnp.logical_and(hit, valid)
                pred = jnp.where(valid, pred, 0.0)
            onehot = hit.astype(jnp.float32)

            # Lane-dense accumulation: pure VALU adds, no cross-lane reduce.
            inter_acc[...] += pred * onehot
            sum_acc[...] += pred + onehot
            return carry

        lax.fori_loop(0, n_chunks, body, 0)

    all_in_range = (n_split * nkps == nk_total)        # static
    if has_partial:
        @pl.when(global_t < nk_total - 1)
        def _full_tiles():
            accumulate(masked=False)

        @pl.when(global_t == nk_total - 1)
        def _tail_tile():
            accumulate(masked=True)
    else:
        if all_in_range:
            accumulate(masked=False)
        else:
            @pl.when(global_t < nk_total)
            def _full_tiles():
                accumulate(masked=False)

    @pl.when(k == nkps - 1)
    def _finalize():
        inter = jnp.sum(inter_acc[...], axis=1, keepdims=True)         # (C, 1)
        total = jnp.sum(sum_acc[...], axis=1, keepdims=True)           # (C, 1)
        union = total - inter            # = sum(pred) + sum(onehot) - inter
        out_ref[0, 0, :, 0:1] = inter
        out_ref[0, 0, :, 1:2] = union


def soft_iou_loss(logits, target, n_classes, *, max_tile_lanes=65536,
                  vmem_budget_bytes=20 * 1024 * 1024, spatial_splits=None):
    """SoftIoULoss forward.

    logits: (N, C, H, W) float (f32 or bf16 — bf16 recommended on v5e, it
            halves the dominant HBM stream), target: (N, H, W) int, 255 = ignore.
    """
    N, C, H, W = logits.shape
    assert C == n_classes
    hw = H * W

    x = logits.reshape(N, C, hw)                       # native dtype, no upcast
    t = target.reshape(N, 1, hw).astype(jnp.int32)
    # TODO(synk): stream labels as uint8 (255 fits) for a further v5e HBM win.

    # --- spatial tile: multiple of 128 lanes, sized from a VMEM budget that is
    # safe on v7x (64 MiB physical / 32 MiB scoped) as well as v5e/v6e.
    dtype_bytes = jnp.dtype(x.dtype).itemsize
    sublane = {4: 8, 2: 16, 1: 32}.get(dtype_bytes, 8)
    c_pad = _round_up(C, sublane)
    # double-buffered logits block + (sublane-padded) int32 label block, per lane
    bytes_per_lane = 2 * (c_pad * dtype_bytes + 8 * 4)
    vmem_cap = max(128, (vmem_budget_bytes // bytes_per_lane) // 128 * 128)
    cap = max(128, min((max_tile_lanes // 128) * 128, vmem_cap))
    tile = min(cap, max(128, (hw // 128) * 128))
    chunk = _pick_chunk(tile, C)

    nk_total = pl.cdiv(hw, tile)
    has_partial = (hw % tile) != 0

    # --- keep a parallel axis of extent >= 2 when N == 1 so both v7x
    # TensorCores get work (no effect on single-TC v5e/v6e).
    if spatial_splits is None:
        spatial_splits = 2 if N == 1 else 1
    n_split = max(1, min(spatial_splits, nk_total))
    nkps = pl.cdiv(nk_total, n_split)                  # tiles per shard

    kernel = functools.partial(
        _softiou_kernel, hw=hw, tile=tile, chunk=chunk, n_classes=C,
        nk_total=nk_total, nkps=nkps, n_split=n_split, has_partial=has_partial)

    def spatial_map(n, p, k):
        # Clamp so out-of-range shard steps (skipped via pl.when in the kernel)
        # still DMA a valid block.
        return (n, 0, jnp.minimum(p * nkps + k, nk_total - 1))

    out = pl.pallas_call(
        kernel,
        grid=(N, n_split, nkps),
        in_specs=[
            pl.BlockSpec((1, C, tile), spatial_map),
            pl.BlockSpec((1, 1, tile), spatial_map),
        ],
        out_specs=pl.BlockSpec((1, 1, C, 2), lambda n, p, k: (n, p, 0, 0)),
        out_shape=jax.ShapeDtypeStruct((N, n_split, C, 2), jnp.float32),
        scratch_shapes=[
            pltpu.VMEM((C, chunk), jnp.float32),   # inter partials (lane-dense)
            pltpu.VMEM((C, chunk), jnp.float32),   # sum(pred)+sum(onehot) partials
        ],
        compiler_params=pltpu.CompilerParams(
            dimension_semantics=("parallel", "parallel", "arbitrary"),
            vmem_limit_bytes=32 * 1024 * 1024,
        ),
    )(x, t)

    inter = out[..., 0].sum(axis=1)                    # (N, C)
    union = out[..., 1].sum(axis=1)                    # (N, C)
    loss = inter / (union + 1e-16)
    return -jnp.mean(loss)


def _reference_loss(logits, target, n_classes):
    """Pure-JAX reference mirroring the PyTorch module."""
    N, C, H, W = logits.shape
    pred = jax.nn.softmax(logits.astype(jnp.float32), axis=1)
    tgt = jnp.where(target == 255, n_classes, target)
    onehot = jax.nn.one_hot(tgt, n_classes + 1, axis=1, dtype=jnp.float32)
    onehot = onehot[:, :-1, :, :]
    inter = (pred * onehot).reshape(N, C, -1).sum(2)
    union = (pred + onehot - pred * onehot).reshape(N, C, -1).sum(2)
    return -jnp.mean(inter / (union + 1e-16))


def _make_inputs(key, N, C, H, W, dtype=jnp.float32):
    k1, k2, k3 = jax.random.split(key, 3)
    logits = jax.random.normal(k1, (N, C, H, W), dtype=jnp.float32).astype(dtype)
    target = jax.random.randint(k2, (N, H, W), 0, C, dtype=jnp.int32)
    ignore = jax.random.uniform(k3, (N, H, W)) < 0.1      # exercise the 255 path
    target = jnp.where(ignore, 255, target)
    return logits, target


if __name__ == "__main__":
    n_classes = 4
    key = jax.random.PRNGKey(0)
    TOL = dict(atol=2e-3, rtol=2e-3)   # approx EUP reciprocal in the softmax

    # 1) single-tile path (HW fits in one lane tile)
    logits, target = _make_inputs(key, 2, n_classes, 16, 16)
    loss = jax.block_until_ready(soft_iou_loss(logits, target, n_classes))
    ref = jax.block_until_ready(_reference_loss(logits, target, n_classes))
    assert jnp.allclose(loss, ref, **TOL), ("single-tile", loss, ref)

    # 2) multi-tile accumulation path (two 128-lane tiles, no remainder)
    loss2 = jax.block_until_ready(
        soft_iou_loss(logits, target, n_classes, max_tile_lanes=128))
    assert jnp.allclose(loss2, ref, **TOL), ("multi-tile", loss2, ref)

    # 3) remainder-tile masking path (HW = 270, tiles of 128 -> masked tail)
    logits3, target3 = _make_inputs(jax.random.PRNGKey(1), 2, n_classes, 18, 15)
    loss3 = jax.block_until_ready(
        soft_iou_loss(logits3, target3, n_classes, max_tile_lanes=128))
    ref3 = jax.block_until_ready(_reference_loss(logits3, target3, n_classes))
    assert jnp.allclose(loss3, ref3, **TOL), ("masked-tail", loss3, ref3)

    # 4) native bf16 logits streamed without a wrapper upcast
    logits_bf16 = logits.astype(jnp.bfloat16)
    loss_bf = jax.block_until_ready(soft_iou_loss(logits_bf16, target, n_classes))
    ref_bf = jax.block_until_ready(_reference_loss(logits_bf16, target, n_classes))
    assert jnp.allclose(loss_bf, ref_bf, **TOL), ("bf16", loss_bf, ref_bf)

    # 5) N == 1: spatial axis split over two parallel shards (v7x 2-TC path),
    #    including a clamped/skipped out-of-range shard step and a masked tail.
    logits5, target5 = _make_inputs(jax.random.PRNGKey(2), 1, n_classes, 18, 15)
    loss5 = jax.block_until_ready(
        soft_iou_loss(logits5, target5, n_classes, max_tile_lanes=128))
    ref5 = jax.block_until_ready(_reference_loss(logits5, target5, n_classes))
    assert jnp.allclose(loss5, ref5, **TOL), ("spatial-split", loss5, ref5)

    print("KERNEL_OK")
</pallas_src>

<mosaic_0001>
module attributes {stable_mosaic.version = 11 : i64} {
  func.func @_softiou_kernel(%arg0: i32, %arg1: i32, %arg2: i32, %arg3: memref<1x4x256xf32, #tpu.memory_space<vmem>>, %arg4: memref<1x1x256xi32, #tpu.memory_space<vmem>>, %arg5: memref<1x1x4x2xf32, #tpu.memory_space<vmem>>, %arg6: memref<4x256xf32, #tpu.memory_space<vmem>>, %arg7: memref<4x256xf32, #tpu.memory_space<vmem>>) attributes {dimension_semantics = [#tpu.dimension_semantics<parallel>, #tpu.dimension_semantics<parallel>, #tpu.dimension_semantics<arbitrary>], iteration_bounds = array<i64: 2, 1, 1>, scalar_prefetch = 0 : i64, scratch_operands = 2 : i64, tpu.core_type = #tpu.core_type<tc>, window_params = [{transform_indices = @transform_0, window_bounds = array<i64: 1, 4, 256>}, {transform_indices = @transform_1, window_bounds = array<i64: 1, 1, 256>}, {transform_indices = @transform_2, window_bounds = array<i64: 1, 1, 4, 2>}]} {
    %c0_i32 = arith.constant 0 : i32
    %0 = arith.cmpi eq, %arg2, %c0_i32 : i32
    %1 = arith.extui %0 : i1 to i32
    %c0_i32_0 = arith.constant 0 : i32
    %2 = arith.cmpi ne, %1, %c0_i32_0 : i32
    scf.if %2 {
      %cst_16 = arith.constant 0.000000e+00 : f32
      %38 = vector.broadcast %cst_16 : f32 to vector<4x256xf32>
      %c0_17 = arith.constant 0 : index
      %c0_18 = arith.constant 0 : index
      %39 = vector.load %arg6[%c0_17, %c0_18] : memref<4x256xf32, #tpu.memory_space<vmem>>, vector<4x256xf32>
      tpu.vector_store %arg6[%c0_17, %c0_18], %38 {strides = array<i32>} : memref<4x256xf32, #tpu.memory_space<vmem>>, vector<4x256xf32>,
      %cst_19 = arith.constant 0.000000e+00 : f32
      %40 = vector.broadcast %cst_19 : f32 to vector<4x256xf32>
      %c0_20 = arith.constant 0 : index
      %c0_21 = arith.constant 0 : index
      %41 = vector.load %arg7[%c0_20, %c0_21] : memref<4x256xf32, #tpu.memory_space<vmem>>, vector<4x256xf32>
      tpu.vector_store %arg7[%c0_20, %c0_21], %40 {strides = array<i32>} : memref<4x256xf32, #tpu.memory_space<vmem>>, vector<4x256xf32>,
    } else {
    }
    %3 = tpu.iota {dimensions = array<i32: 0>} : vector<4x1xi32>
    %c0_i32_1 = arith.constant 0 : i32
    %c256_i32 = arith.constant 256 : i32
    %4 = arith.muli %c0_i32_1, %c256_i32 : i32
    %5 = tpu.assume_multiple %4, 256 : i32
    %c0 = arith.constant 0 : index
    %c0_2 = arith.constant 0 : index
    %6 = arith.index_cast %5 : i32 to index
    %7 = vector.load %arg3[%c0, %c0_2, %6] : memref<1x4x256xf32, #tpu.memory_space<vmem>>, vector<1x4x256xf32>
    %8 = vector.shape_cast %7 : vector<1x4x256xf32> to vector<4x256xf32>
    %c0_3 = arith.constant 0 : index
    %c0_4 = arith.constant 0 : index
    %9 = arith.index_cast %5 : i32 to index
    %10 = vector.load %arg4[%c0_3, %c0_4, %9] : memref<1x1x256xi32, #tpu.memory_space<vmem>>, vector<1x1x256xi32>
    %11 = vector.shape_cast %10 : vector<1x1x256xi32> to vector<1x256xi32>
    %cst = arith.constant dense<0xFF800000> : vector<256xf32>
    %12 = vector.multi_reduction <maximumf>, %8, %cst [0] : vector<4x256xf32> to vector<256xf32>
    %13 = vector.shape_cast %12 : vector<256xf32> to vector<1x256xf32>
    %14 = vector.broadcast %13 : vector<1x256xf32> to vector<4x256xf32>
    %15 = arith.subf %8, %14 : vector<4x256xf32>
    %16 = math.exp %15 : vector<4x256xf32>
    %cst_5 = arith.constant dense<0.000000e+00> : vector<256xf32>
    %17 = vector.multi_reduction <add>, %16, %cst_5 [0] : vector<4x256xf32> to vector<256xf32>
    %18 = vector.shape_cast %17 : vector<256xf32> to vector<1x256xf32>
    %19 = tpu.reciprocal %18 {approx = true} : vector<1x256xf32> -> vector<1x256xf32>
    %20 = vector.broadcast %19 : vector<1x256xf32> to vector<4x256xf32>
    %21 = arith.mulf %16, %20 : vector<4x256xf32>
    %22 = vector.broadcast %11 : vector<1x256xi32> to vector<4x256xi32>
    %23 = vector.broadcast %3 : vector<4x1xi32> to vector<4x256xi32>
    %24 = arith.cmpi eq, %22, %23 : vector<4x256xi32>
    %25 = arith.extui %24 : vector<4x256xi1> to vector<4x256xi32>
    %26 = arith.sitofp %25 : vector<4x256xi32> to vector<4x256xf32>
    %c0_6 = arith.constant 0 : index
    %c0_7 = arith.constant 0 : index
    %27 = vector.load %arg6[%c0_6, %c0_7] : memref<4x256xf32, #tpu.memory_space<vmem>>, vector<4x256xf32>
    %28 = arith.mulf %21, %26 : vector<4x256xf32>
    %29 = arith.addf %27, %28 : vector<4x256xf32>
    %c0_8 = arith.constant 0 : index
    %c0_9 = arith.constant 0 : index
    %30 = vector.load %arg6[%c0_8, %c0_9] : memref<4x256xf32, #tpu.memory_space<vmem>>, vector<4x256xf32>
    tpu.vector_store %arg6[%c0_8, %c0_9], %29 {strides = array<i32>} : memref<4x256xf32, #tpu.memory_space<vmem>>, vector<4x256xf32>,
    %c0_10 = arith.constant 0 : index
    %c0_11 = arith.constant 0 : index
    %31 = vector.load %arg7[%c0_10, %c0_11] : memref<4x256xf32, #tpu.memory_space<vmem>>, vector<4x256xf32>
    %32 = arith.addf %21, %26 : vector<4x256xf32>
    %33 = arith.addf %31, %32 : vector<4x256xf32>
    %c0_12 = arith.constant 0 : index
    %c0_13 = arith.constant 0 : index
    %34 = vector.load %arg7[%c0_12, %c0_13] : memref<4x256xf32, #tpu.memory_space<vmem>>, vector<4x256xf32>
    tpu.vector_store %arg7[%c0_12, %c0_13], %33 {strides = array<i32>} : memref<4x256xf32, #tpu.memory_space<vmem>>, vector<4x256xf32>,
    %c1_i32 = arith.constant 1 : i32
    %c0_i32_14 = arith.constant 0 : i32
    %35 = arith.cmpi eq, %arg2, %c0_i32_14 : i32
    %36 = arith.extui %35 : i1 to i32
    %c0_i32_15 = arith.constant 0 : i32
    %37 = arith.cmpi ne, %36, %c0_i32_15 : i32
    scf.if %37 {
      %c0_16 = arith.constant 0 : index
      %c0_17 = arith.constant 0 : index
      %38 = vector.load %arg6[%c0_16, %c0_17] : memref<4x256xf32, #tpu.memory_space<vmem>>, vector<4x256xf32>
      %cst_18 = arith.constant dense<0.000000e+00> : vector<4xf32>
      %39 = vector.multi_reduction <add>, %38, %cst_18 [1] : vector<4x256xf32> to vector<4xf32>
      %40 = vector.shape_cast %39 : vector<4xf32> to vector<4x1xf32>
      %c0_19 = arith.constant 0 : index
      %c0_20 = arith.constant 0 : index
      %41 = vector.load %arg7[%c0_19, %c0_20] : memref<4x256xf32, #tpu.memory_space<vmem>>, vector<4x256xf32>
      %cst_21 = arith.constant dense<0.000000e+00> : vector<4xf32>
      %42 = vector.multi_reduction <add>, %41, %cst_21 [1] : vector<4x256xf32> to vector<4xf32>
      %43 = vector.shape_cast %42 : vector<4xf32> to vector<4x1xf32>
      %44 = arith.subf %43, %40 : vector<4x1xf32>
      %c0_22 = arith.constant 0 : index
      %c0_23 = arith.constant 0 : index
      %c0_24 = arith.constant 0 : index
      %c0_25 = arith.constant 0 : index
      %45 = vector.load %arg5[%c0_22, %c0_23, %c0_24, %c0_25] : memref<1x1x4x2xf32, #tpu.memory_space<vmem>>, vector<1x1x4x1xf32>
      %46 = vector.shape_cast %45 : vector<1x1x4x1xf32> to vector<4x1xf32>
      %47 = vector.shape_cast %40 : vector<4x1xf32> to vector<1x1x4x1xf32>
      tpu.vector_store %arg5[%c0_22, %c0_23, %c0_24, %c0_25], %47 {strides = array<i32>} : memref<1x1x4x2xf32, #tpu.memory_space<vmem>>, vector<1x1x4x1xf32>,
      %c0_26 = arith.constant 0 : index
      %c0_27 = arith.constant 0 : index
      %c0_28 = arith.constant 0 : index
      %c1 = arith.constant 1 : index
      %48 = vector.load %arg5[%c0_26, %c0_27, %c0_28, %c1] : memref<1x1x4x2xf32, #tpu.memory_space<vmem>>, vector<1x1x4x1xf32>
      %49 = vector.shape_cast %48 : vector<1x1x4x1xf32> to vector<4x1xf32>
      %50 = vector.shape_cast %44 : vector<4x1xf32> to vector<1x1x4x1xf32>
      tpu.vector_store %arg5[%c0_26, %c0_27, %c0_28, %c1], %50 {strides = array<i32>} : memref<1x1x4x2xf32, #tpu.memory_space<vmem>>, vector<1x1x4x1xf32>,
    } else {
    }
    return
  }
  func.func @transform_0(%arg0: i32, %arg1: i32, %arg2: i32) -> (i32, i32, i32) {
    %c1_i32 = arith.constant 1 : i32
    %0 = arith.muli %arg1, %c1_i32 : i32
    %1 = arith.addi %0, %arg2 : i32
    %c0_i32 = arith.constant 0 : i32
    %2 = arith.minsi %1, %c0_i32 : i32
    %c0_i32_0 = arith.constant 0 : i32
    %c0_i32_1 = arith.constant 0 : i32
    return %arg0, %c0_i32_0, %2 : i32, i32, i32
  }
  func.func @transform_1(%arg0: i32, %arg1: i32, %arg2: i32) -> (i32, i32, i32) {
    %c1_i32 = arith.constant 1 : i32
    %0 = arith.muli %arg1, %c1_i32 : i32
    %1 = arith.addi %0, %arg2 : i32
    %c0_i32 = arith.constant 0 : i32
    %2 = arith.minsi %1, %c0_i32 : i32
    %c0_i32_0 = arith.constant 0 : i32
    %c0_i32_1 = arith.constant 0 : i32
    return %arg0, %c0_i32_0, %2 : i32, i32, i32
  }
  func.func @transform_2(%arg0: i32, %arg1: i32, %arg2: i32) -> (i32, i32, i32, i32) {
    %c0_i32 = arith.constant 0 : i32
    %c0_i32_0 = arith.constant 0 : i32
    %c0_i32_1 = arith.constant 0 : i32
    return %arg0, %arg1, %c0_i32, %c0_i32_0 : i32, i32, i32, i32
  }
}

</mosaic_0001>

<llo_original>
// kernel: tpu_custom_call.1
$region0: #{tpu_custom_call.1}
  #allocation0 [shape = 'u32[]', space=smem, size = 0x4, offset = 0x4, fixed_abs, tag = 'smem constant byte address 0x4 - core index']
  #allocation1 [shape = 'u32[144,128]{1,0:T(1,128)}', space=vmem, size = 0x12000, scoped, tag = 'internal scratch']
  #allocation2 [shape = 'f32[4,256]{1,0:T(4,128)}', space=vmem, size = 0x1000, scoped, tag = 'scratch operand']
  #allocation3 [shape = 'f32[4,256]{1,0:T(4,128)}', space=vmem, size = 0x1000, scoped, tag = 'scratch operand']
  %s0 = inlined_call_operand.hbm [shape: f32[2,4,256], index: 0, kind: input, shape index: {}]
  %s1 = inlined_call_operand.hbm [shape: s32[2,1,256], index: 1, kind: input, shape index: {}]
  %s2 = inlined_call_operand.vmem [shape: f32[2,1,4,2], index: 2, kind: output, shape index: {}]
  %s3 = sld [smem:[#allocation0]]
  $region57: #{tpu_custom_call.1} parent=0
    _
  %s5 = ssub.s32 1, %s3
  %s6 = scalar_select 0, %s5, %s3
  $region1: #{tpu_custom_call.1} parent=0
    #allocation4 [shape = 'u8[8192]{0}', space=vmem, size = 0x2000, scoped, tag = 'input window, operand 0']
    #allocation5 [shape = 's32[2]{0}', space=sflag, size = 0x8, scoped, tag = 'scoped memory for tpu_custom_call.1']
    #allocation6 [shape = 'u8[2048]{0}', space=vmem, size = 0x800, scoped, tag = 'input window, operand 1']
    #allocation7 [shape = 's32[2]{0}', space=sflag, size = 0x8, scoped, tag = 'scoped memory for tpu_custom_call.1']
    %7 = vsyncpa [#allocation5], 0
    %s8 = scalar_lea.sflag [#allocation5], 1
    %9 = vsyncpa %s8, 0
    %10 = vsyncpa [#allocation7], 0
    %s11 = scalar_lea.sflag [#allocation7], 1
    %12 = vsyncpa %s11, 0
    loop: start=0, step=1, limit=4
    $region2: #{tpu_custom_call.1} parent=1 // loop_pre_header
      _
    $region3: #{tpu_custom_call.1} parent=1 // loop_header
      %s14 = sphi 0, %s18
      %p15 = scmp.ge.s32.totalorder %s14, 4
      %s21 = sphi 0, %s40
      %s22 = sphi 0, %s36
      %s23 = sphi 0, %s32
      %s24 = sphi 0, %s21
      %s25 = sphi 0, %s22
      %s26 = sphi 0, %s23
      %s27 = sphi 0, %s24
      %s28 = sphi 0, %s25
      %s29 = sphi 0, %s26
      %s51 = sphi 0, %s53
      %s54 = sphi 0, %s51
      %s55 = sphi 0, %s54
      %s71 = sphi 0, %s55
      %s85 = sphi 0, %s87
      %s88 = sphi 0, %s85
      %s89 = sphi 0, %s88
      %s105 = sphi 0, %s89
      %s113 = sphi 0, %s115
      %s116 = sphi 0, %s113
      %s117 = sphi 0, %s116
      %s133 = sphi 0, %s117
    $region4: #{tpu_custom_call.1} parent=1 // loop_header_branch
      %17 = sbr.rel (%p15) target = $region8
    $region5: #{tpu_custom_call.1} parent=1 // loop_body
      %s19 = ssub.s32 %s14, 1
      %s20 = ssub.s32 %s14, 2
      %s30 = sadd.s32 1, %s23
      %p31 = scmp.ge.s32.totalorder %s30, 1
      %s32 = scalar_select %p31, 0, %s30
      %s33 = sadd.s32 1, %s22
      %s34 = scalar_select %p31, %s33, %s22
      %p35 = scmp.ge.s32.totalorder %s34, 1
      %s36 = scalar_select %p35, 0, %s34
      %s37 = sadd.s32 1, %s21
      %s38 = scalar_select %p35, %s37, %s21
      %p39 = scmp.ge.s32.totalorder %s38, 2
      %s40 = scalar_select %p39, 0, %s38
      %s41 = sadd.s32 %s22, %s23
      %p42 = scmp.lt.s32.totalorder %s41, 0
      %s43 = scalar_select %p42, %s41, 0
      %s44 = sadd.s32 %s36, %s32
      %p45 = scmp.lt.s32.totalorder %s44, 0
      %s46 = scalar_select %p45, %s44, 0
      %s47 = ssub.s32 %s21, %s40
      %s48 = ssub.s32 %s43, %s46
      %s49 = sor.u32 %s47, %s48
      %p50 = scmp.eq.s32.totalorder %s49, 0
      %s52 = sadd.s32 %s51, 1
      %s53 = scalar_select %p50, %s51, %s52
      %p56 = pneg %p50
      %p57 = scmp.eq.s32.totalorder %s14, 1
      %p58 = por %p56, %p57
      %p59 = scmp.ne.s32.totalorder %s51, %s54
      %p60 = scmp.eq.s32.totalorder %s14, 0
      %p61 = por %p59, %p60
      %p62 = scmp.ne.s32.totalorder %s51, %s54
      %p63 = scmp.eq.s32.totalorder %s19, 1
      %p64 = por %p62, %p63
      %p65 = scmp.ne.s32.totalorder %s54, %s55
      %p66 = scmp.eq.s32.totalorder %s19, 0
      %p67 = por %p65, %p66
      %p68 = scmp.ne.s32.totalorder %s54, %s55
      %p69 = scmp.eq.s32.totalorder %s20, 1
      %p70 = por %p68, %p69
      %p72 = scmp.ne.s32.totalorder %s55, %s71
      %p73 = scmp.eq.s32.totalorder %s20, 0
      %p74 = por %p72, %p73
      %s75 = sadd.s32 %s22, %s23
      %p76 = scmp.lt.s32.totalorder %s75, 0
      %s77 = scalar_select %p76, %s75, 0
      %s78 = sadd.s32 %s36, %s32
      %p79 = scmp.lt.s32.totalorder %s78, 0
      %s80 = scalar_select %p79, %s78, 0
      %s81 = ssub.s32 %s21, %s40
      %s82 = ssub.s32 %s77, %s80
      %s83 = sor.u32 %s81, %s82
      %p84 = scmp.eq.s32.totalorder %s83, 0
      %s86 = sadd.s32 %s85, 1
      %s87 = scalar_select %p84, %s85, %s86
      %p90 = pneg %p84
      %p91 = scmp.eq.s32.totalorder %s14, 1
      %p92 = por %p90, %p91
      %p93 = scmp.ne.s32.totalorder %s85, %s88
      %p94 = scmp.eq.s32.totalorder %s14, 0
      %p95 = por %p93, %p94
      %p96 = scmp.ne.s32.totalorder %s85, %s88
      %p97 = scmp.eq.s32.totalorder %s19, 1
      %p98 = por %p96, %p97
      %p99 = scmp.ne.s32.totalorder %s88, %s89
      %p100 = scmp.eq.s32.totalorder %s19, 0
      %p101 = por %p99, %p100
      %p102 = scmp.ne.s32.totalorder %s88, %s89
      %p103 = scmp.eq.s32.totalorder %s20, 1
      %p104 = por %p102, %p103
      %p106 = scmp.ne.s32.totalorder %s89, %s105
      %p107 = scmp.eq.s32.totalorder %s20, 0
      %p108 = por %p106, %p107
      %s109 = ssub.s32 %s21, %s40
      %s110 = ssub.s32 %s22, %s36
      %s111 = sor.u32 %s109, %s110
      %p112 = scmp.eq.s32.totalorder %s111, 0
      %s114 = sadd.s32 %s113, 1
      %s115 = scalar_select %p112, %s113, %s114
      %p118 = pneg %p112
      %p119 = scmp.eq.s32.totalorder %s14, 1
      %p120 = por %p118, %p119
      %p121 = scmp.ne.s32.totalorder %s113, %s116
      %p122 = scmp.eq.s32.totalorder %s14, 0
      %p123 = por %p121, %p122
      %p124 = scmp.ne.s32.totalorder %s113, %s116
      %p125 = scmp.eq.s32.totalorder %s19, 1
      %p126 = por %p124, %p125
      %p127 = scmp.ne.s32.totalorder %s116, %s117
      %p128 = scmp.eq.s32.totalorder %s19, 0
      %p129 = por %p127, %p128
      %p130 = scmp.ne.s32.totalorder %s116, %s117
      %p131 = scmp.eq.s32.totalorder %s20, 1
      %p132 = por %p130, %p131
      %p134 = scmp.ne.s32.totalorder %s117, %s133
      %p135 = scmp.eq.s32.totalorder %s20, 0
      %p136 = por %p134, %p135
      %p137 = scmp.le.s32.totalorder 1, %s14
      %p138 = scmp.lt.s32.totalorder %s14, 3
      %p139 = pnand %p137, %p138
      %p140 = pneg %p139
      // Predicated region
      $region9: #{tpu_custom_call.1} parent=5 // pred_check
        _
      $region10: #{tpu_custom_call.1} parent=5 // pred_check_branch
        %142 = sbr.rel (%p139) target = $region12
      $region11: #{tpu_custom_call.1} parent=5 // pred_region
        %s143 = ssub.s32 %s14, 1
      $region12: #{tpu_custom_call.1} parent=5 // pred_fallthru
        _
      %p144 = scmp.lt.s32.totalorder %s14, 2
      // Predicated region
      $region13: #{tpu_custom_call.1} parent=5 // pred_check
        %p145 = pneg %p144
      $region14: #{tpu_custom_call.1} parent=5 // pred_check_branch
        %147 = sbr.rel (%p145) target = $region16
      $region15: #{tpu_custom_call.1} parent=5 // pred_region
        // Predicated region
        $region17: #{tpu_custom_call.1} parent=15 // pred_check
          %p148 = pneg %p61
        $region18: #{tpu_custom_call.1} parent=15 // pred_check_branch
          %150 = sbr.rel (%p148) target = $region20
        $region19: #{tpu_custom_call.1} parent=15 // pred_region
          %s151 = sand.u32 %s51, 1
          %s152 = scalar_lea.sflag [#allocation5], %s151
          %s153 = sand.u32 %s51, 1
          %s154 = smul.addr %s153, 8
          %s155 = scalar_lea.vmem [#allocation4], %s154
          %s156 = sadd.s32 %s22, %s23
          %p157 = scmp.lt.s32.totalorder %s156, 0
          %s158 = scalar_select %p157, %s156, 0
          %s159 = smul.u32 2, %s158
          %s161 = ssub.s32 128, 128
          %162 = vsyncadd %s152, %s161
          %s163 = smul.addr %s21, 2
          %s164 = sadd.s32 %s159, %s163
          %s165 = smul.addr %s164, 64
          %s166 = scalar_lea.hbm %s0, %s165
          %s168 = sshll.u32 %s155, 4
          %s169 = int_to_ptr.vmem [resolvable:$true] %s168
          %171 = dma.hbm_to_vmem [thread:$0]  %s166, 128, %s169, %s152
        $region20: #{tpu_custom_call.1} parent=15 // pred_fallthru
          _
        // Predicated region
        $region21: #{tpu_custom_call.1} parent=15 // pred_check
          %p172 = pneg %p95
        $region22: #{tpu_custom_call.1} parent=15 // pred_check_branch
          %174 = sbr.rel (%p172) target = $region24
        $region23: #{tpu_custom_call.1} parent=15 // pred_region
          %s175 = sand.u32 %s85, 1
          %s176 = scalar_lea.sflag [#allocation7], %s175
          %s177 = sand.u32 %s85, 1
          %s178 = smul.addr %s177, 2
          %s179 = scalar_lea.vmem [#allocation6], %s178
          %s180 = sadd.s32 %s22, %s23
          %p181 = scmp.lt.s32.totalorder %s180, 0
          %s182 = scalar_select %p181, %s180, 0
          %s183 = smul.u32 2, %s182
          %s185 = ssub.s32 32, 32
          %186 = vsyncadd %s176, %s185
          %s187 = smul.addr %s21, 2
          %s188 = sadd.s32 %s183, %s187
          %s189 = smul.addr %s188, 16
          %s190 = scalar_lea.hbm %s1, %s189
          %s192 = sshll.u32 %s179, 4
          %s193 = int_to_ptr.vmem [resolvable:$true] %s192
          %195 = dma.hbm_to_vmem [thread:$0]  %s190, 32, %s193, %s176
        $region24: #{tpu_custom_call.1} parent=15 // pred_fallthru
          _
      $region16: #{tpu_custom_call.1} parent=5 // pred_fallthru
        _
      %p196 = scmp.le.s32.totalorder 1, %s14
      %p197 = scmp.lt.s32.totalorder %s14, 3
      %p198 = pnand %p196, %p197
      %p199 = pneg %p198
      // Predicated region
      $region25: #{tpu_custom_call.1} parent=5 // pred_check
        _
      $region26: #{tpu_custom_call.1} parent=5 // pred_check_branch
        %201 = sbr.rel (%p198) target = $region28
      $region27: #{tpu_custom_call.1} parent=5 // pred_region
        %s202 = ssub.s32 %s14, 1
        %s203 = sand.u32 %s54, 1
        %s204 = scalar_lea.sflag [#allocation5], %s203
        %s205 = sand.u32 %s54, 1
        %s206 = smul.addr %s205, 8
        %s207 = scalar_lea.vmem [#allocation4], %s206
        // Predicated region
        $region29: #{tpu_custom_call.1} parent=27 // pred_check
          %p208 = pneg %p67
        $region30: #{tpu_custom_call.1} parent=27 // pred_check_branch
          %210 = sbr.rel (%p208) target = $region32
        $region31: #{tpu_custom_call.1} parent=27 // pred_region
          %211 = dma.done %s204, 128
        $region32: #{tpu_custom_call.1} parent=27 // pred_fallthru
          _
        %s212 = sand.u32 %s88, 1
        %s213 = scalar_lea.sflag [#allocation7], %s212
        %s214 = sand.u32 %s88, 1
        %s215 = smul.addr %s214, 2
        %s216 = scalar_lea.vmem [#allocation6], %s215
        // Predicated region
        $region33: #{tpu_custom_call.1} parent=27 // pred_check
          %p217 = pneg %p101
        $region34: #{tpu_custom_call.1} parent=27 // pred_check_branch
          %219 = sbr.rel (%p217) target = $region36
        $region35: #{tpu_custom_call.1} parent=27 // pred_region
          %220 = dma.done %s213, 32
        $region36: #{tpu_custom_call.1} parent=27 // pred_fallthru
          _
        %s221 = sand.u32 %s54, 1
        %s222 = scalar_lea.sflag [#allocation5], %s221
        %s223 = sand.u32 %s54, 1
        %s224 = smul.addr %s223, 8
        %s225 = scalar_lea.vmem [#allocation4], %s224
        %p226 = pneg %p67
        %p227 = pneg %p64
        %s228 = sand.u32 %s88, 1
        %s229 = scalar_lea.sflag [#allocation7], %s228
        %s230 = sand.u32 %s88, 1
        %s231 = smul.addr %s230, 2
        %s232 = scalar_lea.vmem [#allocation6], %s231
        %p233 = pneg %p101
        %p234 = pneg %p98
        %p235 = pneg %p129
        %p236 = pneg %p126
        %p237 = scmp.lt.s32.totalorder %s24, 1
        %s238 = scalar_select %p237, %s24, 1
        %p239 = scmp.lt.s32.totalorder %s25, 0
        %s240 = scalar_select %p239, %s25, 0
        %s241 = sadd.s32 %s240, %s238
        %s242 = smul.addr %s241, 4
        %s243 = scalar_lea.vmem %s2, %s242
        %s244 = sadd.s32 %s25, %s26
        %p245 = scmp.lt.s32.totalorder %s244, 0
        %s246 = scalar_select %p245, %s244, 0
        %s247 = smul.u32 2, %s246
        %s248 = sadd.s32 %s25, %s26
        %p249 = scmp.lt.s32.totalorder %s248, 0
        %s250 = scalar_select %p249, %s248, 0
        %s251 = smul.u32 2, %s250
        %p252 = scmp.lt.s32.totalorder %s24, 1
        %s253 = scalar_select %p252, %s24, 1
        %p254 = scmp.lt.s32.totalorder %s25, 0
        %s255 = scalar_select %p254, %s25, 0
        %s256 = sadd.s32 %s255, %s253
        %s257 = smul.addr %s256, 4
        %s258 = scalar_lea.vmem %s2, %s257
        %p259 = scmp.eq.s32.totalorder %s26, 0
        // Predicated region
        $region37: #{tpu_custom_call.1} parent=27 // pred_check
          %p260 = pneg %p259
        $region38: #{tpu_custom_call.1} parent=27 // pred_check_branch
          %262 = sbr.rel (%p260) target = $region40
        $region39: #{tpu_custom_call.1} parent=27 // pred_region
          %263 = vst [vmem:[#allocation2] sm:$0xff] 0.0
          %264 = vst [vmem:[#allocation3] sm:$0xff] 0.0
        $region40: #{tpu_custom_call.1} parent=27 // pred_fallthru
          _
        %v265 = vlaneseq
        %v266 = vshrl.u32 %v265, 7
        %v267 = vld [vmem:[%s207] sm:$0xff]
        %v268 = vld [vmem:[%s216] sm:$0x3]
        %v270 = vcombine.high %v267, %v267
        %vm272 = vcmask 1043456
        %v273 = vsel %vm272, %v267, -inf
        %v274 = vrot.slane %v273, 4
        %v275 = vmax.f32 %v273, %v274
        %v276 = vrot.slane %v275, 2
        %v277 = vmax.f32 %v275, %v276
        %v278 = vrot.slane %v277, 1
        %v279 = vmax.f32 %v277, %v278
        %v280 = vsel %vm272, %v270, -inf
        %v281 = vrot.slane %v280, 4
        %v282 = vmax.f32 %v280, %v281
        %v283 = vrot.slane %v282, 2
        %v284 = vmax.f32 %v282, %v283
        %v285 = vrot.slane %v284, 1
        %v286 = vmax.f32 %v284, %v285
        %v289 = vcombine.low %v279, %v286
        %v291 = vsub.f32 %v267, %v289
        %v292 = vmul.f32 %v291, 1.442695
        %v293 = vpow.pop %v292
        %v295 = vcombine.high %v293, %v293
        %v297 = vsel %vm272, %v293, 0.0
        %v298 = vrot.slane %v297, 4
        %v299 = vadd.f32 %v297, %v298
        %v300 = vrot.slane %v299, 2
        %v301 = vadd.f32 %v299, %v300
        %v302 = vrot.slane %v301, 1
        %v303 = vadd.f32 %v301, %v302
        %v304 = vsel %vm272, %v295, 0.0
        %v305 = vrot.slane %v304, 4
        %v306 = vadd.f32 %v304, %v305
        %v307 = vrot.slane %v306, 2
        %v308 = vadd.f32 %v306, %v307
        %v309 = vrot.slane %v308, 1
        %v310 = vadd.f32 %v308, %v309
        %v311 = vrcp.pop %v303
        %v312 = vrcp.pop %v310
        %v315 = vcombine.low %v311, %v312
        %v317 = vmul.f32 %v293, %v315
        %v318 = vlaneseq
        %v319 = vshrl.u32 %v318, 7
        %v320 = vsub.s32 0, %v319
        %v321 = vrot.slane %v268, %v320
        %v322 = vlaneseq
        %v323 = vshrl.u32 %v322, 7
        %v324 = vsub.s32 1, %v323
        %v325 = vrot.slane %v268, %v324
        %vm326 = vcmp.eq.s32.totalorder %v321, %v266
        %vm327 = vcmp.eq.s32.totalorder %v325, %v266
        %v328 = vsel %vm326, 1, 0
        %v329 = vsel %vm327, 1, 0
        %v330 = vcvt.s32.f32 %v328
        %v331 = vcvt.s32.f32 %v329
        %v332 = vld [vmem:[#allocation2] sm:$0xff]
        %v335 = vcombine.low %v330, %v331
        %v337 = vmul.f32 %v317, %v335
        %v338 = vadd.f32 %v332, %v337
        %339 = vst [vmem:[#allocation2] sm:$0xff] %v338
        %v340 = vld [vmem:[#allocation3] sm:$0xff]
        %v341 = vadd.f32 %v317, %v335
        %v342 = vadd.f32 %v340, %v341
        %343 = vst [vmem:[#allocation3] sm:$0xff] %v342
        // Predicated region
        $region41: #{tpu_custom_call.1} parent=27 // pred_check
          %p344 = pneg %p259
        $region42: #{tpu_custom_call.1} parent=27 // pred_check_branch
          %346 = sbr.rel (%p344) target = $region44
        $region43: #{tpu_custom_call.1} parent=27 // pred_region
          %v347 = vld [vmem:[#allocation2] sm:$0xff]
          %v349 = vcombine.high %v347, %v347
          %v351 = vsel %vm272, %v347, 0.0
          %v352 = vsel %vm272, %v349, 0.0
          %v353 = vadd.f32 %v351, %v352
          %354 = vadd.xlane.f32.xlu0 %v353
          %v355 = vpop.xlane.xlu0 %354
          %v356 = vld [vmem:[#allocation3] sm:$0xff]
          %v358 = vcombine.high %v356, %v356
          %v360 = vsel %vm272, %v356, 0.0
          %v361 = vsel %vm272, %v358, 0.0
          %v362 = vadd.f32 %v360, %v361
          %363 = vadd.xlane.f32.xlu0 %v362
          %v364 = vpop.xlane.xlu0 %363
          %v365 = vsub.f32 %v364, %v355
          %vm366 = vcmask 3072
          %367 = vst.msk [vmem:[%s258] sm:$0xf] %vm366, %v355
          %vm368 = vcmask 11272
          %369 = vst.msk [vmem:[%s258] sm:$0xf] %vm368, %v365
        $region44: #{tpu_custom_call.1} parent=27 // pred_fallthru
          _
        %p370 = scmp.lt.s32.totalorder %s24, 1
        %s371 = scalar_select %p370, %s24, 1
        %p372 = scmp.lt.s32.totalorder %s25, 0
        %s373 = scalar_select %p372, %s25, 0
        %s374 = sadd.s32 %s373, %s371
        %s375 = smul.addr %s374, 4
        %s376 = scalar_lea.vmem %s2, %s375
        // Predicated region
        $region45: #{tpu_custom_call.1} parent=27 // pred_check
          %p377 = pneg %p126
        $region46: #{tpu_custom_call.1} parent=27 // pred_check_branch
          %379 = sbr.rel (%p377) target = $region48
        $region47: #{tpu_custom_call.1} parent=27 // pred_region
          _
        $region48: #{tpu_custom_call.1} parent=27 // pred_fallthru
          _
      $region28: #{tpu_custom_call.1} parent=5 // pred_fallthru
        _
      %p380 = scmp.le.s32.totalorder 2, %s14
      // Predicated region
      $region49: #{tpu_custom_call.1} parent=5 // pred_check
        %p381 = pneg %p380
      $region50: #{tpu_custom_call.1} parent=5 // pred_check_branch
        %383 = sbr.rel (%p381) target = $region52
      $region51: #{tpu_custom_call.1} parent=5 // pred_region
        %s384 = ssub.s32 %s14, 2
        // Predicated region
        $region53: #{tpu_custom_call.1} parent=51 // pred_check
          %p385 = pneg %p132
        $region54: #{tpu_custom_call.1} parent=51 // pred_check_branch
          %387 = sbr.rel (%p385) target = $region56
        $region55: #{tpu_custom_call.1} parent=51 // pred_region
          %p388 = scmp.lt.s32.totalorder %s27, 1
          %s389 = scalar_select %p388, %s27, 1
          %p390 = scmp.lt.s32.totalorder %s28, 0
          %s391 = scalar_select %p390, %s28, 0
          %s392 = sadd.s32 %s391, %s389
          %s393 = smul.addr %s392, 4
          %s394 = scalar_lea.vmem %s2, %s393
        $region56: #{tpu_custom_call.1} parent=51 // pred_fallthru
          _
      $region52: #{tpu_custom_call.1} parent=5 // pred_fallthru
        _
    $region6: #{tpu_custom_call.1} parent=1 // loop_footer
      %s18 = sadd.s32 1, %s14
    $region7: #{tpu_custom_call.1} parent=1 // loop_footer_branch
      %13 = sbr.rel target = $region3
    $region8: #{tpu_custom_call.1} parent=1 // loop_exit
      _
    %395 = vsyncpa [#allocation5], 1
    %s396 = scalar_lea.sflag [#allocation5], 1
    %397 = vsyncpa %s396, 1
    %398 = vsyncpa [#allocation7], 1
    %s399 = scalar_lea.sflag [#allocation7], 1
    %400 = vsyncpa %s399, 1

</llo_original>
